<compile_context>
chip_gen: v7x
topology: tpu7x:2x2x1
jax: 0.10.0
libtpu: 0.0.40
codegen_flags: <defaults>
</compile_context>

<pallas_src>
import numpy as np
import jax
import jax.numpy as jnp
from jax.experimental import pallas as pl
from jax.experimental.pallas import tpu as pltpu


def _round_up(x, m):
    return ((x + m - 1) // m) * m


def _meta_kernel(xin_ref, emb_ref, w1_ref, b1_ref, wo_ref, bo_ref, out_ref):
    # Fused first stage: [sparse | x] @ W1  (== sparse@Ws@Wm_s + x@Wi@Wm_x),
    # f32 accumulation on the MXU.
    h = jnp.dot(xin_ref[...], w1_ref[...], preferred_element_type=jnp.float32)
    # Folded biases of (sparse_process, input_process, mlp stand-in) plus the
    # per-row timestep embedding (the two tensors the real mlp consumes).
    h = h + b1_ref[...] + emb_ref[...]
    # output_process: Linear(L, F); F is zero-padded to a lane-dense width so
    # the store below is a full-lane vst.
    out = jnp.dot(h.astype(wo_ref.dtype), wo_ref[...],
                  preferred_element_type=jnp.float32)
    out_ref[...] = (out + bo_ref[...]).astype(out_ref.dtype)


def init_params(key, nfeats, latent_dim, sparse_dim, max_len=5000):
    """Deterministic synthetic parameters matching MetaModel.__init__ shapes."""
    ks = jax.random.split(key, 4)

    def linear(k, fan_in, fan_out):
        lim = 1.0 / np.sqrt(fan_in)
        kw, kb = jax.random.split(k)
        w = jax.random.uniform(kw, (fan_in, fan_out), jnp.float32, -lim, lim)
        b = jax.random.uniform(kb, (1, fan_out), jnp.float32, -lim, lim)
        return w, b

    w_in, b_in = linear(ks[0], nfeats, latent_dim)          # input_process
    w_sp, b_sp = linear(ks[1], sparse_dim, latent_dim)      # sparse_process
    # TODO(synk): DiffMotionUNet (self.mlp / self.arch) is not defined anywhere in
    # the reference source; stand-in = one Linear(2L -> L) plus a broadcast-add of
    # the timestep embedding (the two tensors the real mlp consumes).
    w_ml, b_ml = linear(ks[2], 2 * latent_dim, latent_dim)  # mlp stand-in
    w_out, b_out = linear(ks[3], latent_dim, nfeats)        # output_process

    # TimestepEmbeding buffer: pe[:, 0::2] = sin, pe[:, 1::2] = cos
    position = jnp.arange(max_len, dtype=jnp.float32)[:, None]
    div_term = jnp.exp(jnp.arange(0, latent_dim, 2, dtype=jnp.float32)
                       * (-np.log(10000.0) / latent_dim))
    sin = jnp.sin(position * div_term)
    cos = jnp.cos(position * div_term)
    pe = jnp.stack([sin, cos], axis=-1).reshape(max_len, latent_dim)

    return dict(w_in=w_in, b_in=b_in, w_sparse=w_sp, b_sparse=b_sp,
                w_mlp=w_ml, b_mlp=b_ml, w_out=w_out, b_out=b_out, pe=pe)


def meta_model_forward(x, timesteps, sparse_emb, params, force_mask=False,
                       compute_dtype=jnp.bfloat16, tm_max=256):
    B, N, F = x.shape
    S = sparse_emb.shape[-1]
    L = params["w_in"].shape[1]

    # mask_cond_sparse: force_mask=True -> zeros (like the reference, the sparse
    # bias still flows downstream — reproduced exactly by the folded b1 below);
    # eval mode otherwise -> identity.
    if force_mask:
        sparse_emb = jnp.zeros_like(sparse_emb)

    # emb = self.embed_timestep(timesteps): pe gather, pre-expanded to one row
    # per (batch, frame) so the kernel does a plain broadcast-free add.
    emb_rows = jnp.repeat(params["pe"][timesteps].astype(jnp.float32),
                          N, axis=0)                                   # (B*N, L)

    # Wrapper-side affine fold (exact for the Linear(2L, L) mlp stand-in):
    #   concat(h_s, h_x) @ Wm  ==  h_s @ Wm[:L] + h_x @ Wm[L:]
    wm_s, wm_x = params["w_mlp"][:L], params["w_mlp"][L:]
    w1 = jnp.concatenate([params["w_sparse"] @ wm_s,
                          params["w_in"] @ wm_x], axis=0)              # (S+F, L)
    b1 = (params["b_sparse"] @ wm_s + params["b_in"] @ wm_x
          + params["b_mlp"])                                           # (1, L)

    # Fold batch into the matmul M dimension; pad K and output-F to lane width.
    K = S + F
    Kp = _round_up(K, 128)
    Fp = _round_up(F, 128)
    M = B * N
    tm = min(tm_max, _round_up(M, 8))
    Mp = _round_up(M, tm)

    xin = jnp.concatenate([sparse_emb, x], axis=-1).reshape(M, K)
    xin = jnp.pad(xin, ((0, Mp - M), (0, Kp - K))).astype(compute_dtype)
    emb_rows = jnp.pad(emb_rows, ((0, Mp - M), (0, 0)))
    w1 = jnp.pad(w1, ((0, Kp - K), (0, 0))).astype(compute_dtype)
    wo = jnp.pad(params["w_out"], ((0, 0), (0, Fp - F))).astype(compute_dtype)
    bo = jnp.pad(params["b_out"], ((0, 0), (0, Fp - F)))

    resident = lambda shape: pl.BlockSpec(shape, lambda i: (0,) * len(shape))

    out = pl.pallas_call(
        _meta_kernel,
        out_shape=jax.ShapeDtypeStruct((Mp, Fp), x.dtype),
        grid=(Mp // tm,),
        in_specs=[
            pl.BlockSpec((tm, Kp), lambda i: (i, 0)),   # [sparse | x] row tile
            pl.BlockSpec((tm, L), lambda i: (i, 0)),    # timestep-embedding rows
            resident((Kp, L)),                          # fused stage-1 weight
            resident((1, L)),                           # fused stage-1 bias
            resident((L, Fp)),                          # output_process weight
            resident((1, Fp)),                          # output_process bias
        ],
        out_specs=pl.BlockSpec((tm, Fp), lambda i: (i, 0)),
        compiler_params=pltpu.CompilerParams(dimension_semantics=("parallel",)),
    )(xin, emb_rows, w1, b1, wo, bo)

    return out[:M, :F].reshape(B, N, F)


def reference_forward(x, timesteps, sparse_emb, params, force_mask=False):
    """Pure-JAX f32 reference with the original (un-fused) structure."""
    emb = params["pe"][timesteps][:, None, :]                       # (B, 1, L)
    sp = jnp.zeros_like(sparse_emb) if force_mask else sparse_emb
    h_s = sp @ params["w_sparse"] + params["b_sparse"]              # sparse_process
    h_x = x @ params["w_in"] + params["b_in"]                       # input_process
    h = jnp.concatenate([h_s, h_x], axis=-1)                        # concat
    m = h @ params["w_mlp"] + params["b_mlp"] + emb                 # mlp stand-in
    return m @ params["w_out"] + params["b_out"]                    # output_process


if __name__ == "__main__":
    B, N = 2, 8            # batch, nframes (input_motion_length)
    F = 12                 # nfeats
    L = 128                # latent_dim (lane-aligned)
    S = 54                 # sparse_dim (module default)
    MAX_LEN = 1000

    key = jax.random.PRNGKey(0)
    k_par, kx, ks, kt = jax.random.split(key, 4)

    params = init_params(k_par, nfeats=F, latent_dim=L, sparse_dim=S,
                         max_len=MAX_LEN)

    x = jax.random.normal(kx, (B, N, F), dtype=jnp.float32)
    sparse_emb = jax.random.normal(ks, (B, N, S), dtype=jnp.float32)
    timesteps = jax.random.randint(kt, (B,), 0, MAX_LEN, dtype=jnp.int32)

    out_f32 = meta_model_forward(x, timesteps, sparse_emb, params,
                                 compute_dtype=jnp.float32)
    out_bf16 = meta_model_forward(x, timesteps, sparse_emb, params,
                                  compute_dtype=jnp.bfloat16)
    out_mask = meta_model_forward(x, timesteps, sparse_emb, params,
                                  force_mask=True, compute_dtype=jnp.float32)
    jax.block_until_ready((out_f32, out_bf16, out_mask))

    ref = reference_forward(x, timesteps, sparse_emb, params)
    ref_mask = reference_forward(x, timesteps, sparse_emb, params, force_mask=True)

    assert out_f32.shape == (B, N, F)
    np.testing.assert_allclose(np.asarray(out_f32), np.asarray(ref),
                               rtol=1e-4, atol=1e-4)
    np.testing.assert_allclose(np.asarray(out_bf16), np.asarray(ref),
                               rtol=3e-2, atol=3e-2)
    np.testing.assert_allclose(np.asarray(out_mask), np.asarray(ref_mask),
                               rtol=1e-4, atol=1e-4)
    print("KERNEL_OK")
</pallas_src>

<mosaic_0001>
module attributes {stable_mosaic.version = 11 : i64} {
  func.func @_meta_kernel(%arg0: i32, %arg1: memref<16x128xf32, #tpu.memory_space<vmem>>, %arg2: memref<16x128xf32, #tpu.memory_space<vmem>>, %arg3: memref<128x128xf32, #tpu.memory_space<vmem>>, %arg4: memref<1x128xf32, #tpu.memory_space<vmem>>, %arg5: memref<128x128xf32, #tpu.memory_space<vmem>>, %arg6: memref<1x128xf32, #tpu.memory_space<vmem>>, %arg7: memref<16x128xf32, #tpu.memory_space<vmem>>) attributes {dimension_semantics = [#tpu.dimension_semantics<parallel>], iteration_bounds = array<i64: 1>, scalar_prefetch = 0 : i64, scratch_operands = 0 : i64, tpu.core_type = #tpu.core_type<tc>, window_params = [{transform_indices = @transform_0, window_bounds = array<i64: 16, 128>}, {transform_indices = @transform_1, window_bounds = array<i64: 16, 128>}, {pipeline_mode = #tpu.pipeline_mode<synchronous>, transform_indices = @transform_2, window_bounds = array<i64: 128, 128>}, {pipeline_mode = #tpu.pipeline_mode<synchronous>, transform_indices = @transform_3, window_bounds = array<i64: 1, 128>}, {pipeline_mode = #tpu.pipeline_mode<synchronous>, transform_indices = @transform_4, window_bounds = array<i64: 128, 128>}, {pipeline_mode = #tpu.pipeline_mode<synchronous>, transform_indices = @transform_5, window_bounds = array<i64: 1, 128>}, {transform_indices = @transform_6, window_bounds = array<i64: 16, 128>}]} {
    %c0 = arith.constant 0 : index
    %c0_0 = arith.constant 0 : index
    %0 = vector.load %arg1[%c0, %c0_0] : memref<16x128xf32, #tpu.memory_space<vmem>>, vector<16x128xf32>
    %c0_1 = arith.constant 0 : index
    %c0_2 = arith.constant 0 : index
    %1 = vector.load %arg3[%c0_1, %c0_2] : memref<128x128xf32, #tpu.memory_space<vmem>>, vector<128x128xf32>
    %cst = arith.constant dense<0.000000e+00> : vector<16x128xf32>
    %2 = tpu.matmul %0, %1, %cst {dimension_numbers = #tpu.dot_dimension_numbers<[1], [0], [0], [1], [0, 0, 1, 1], [], []>} : vector<16x128xf32>, vector<128x128xf32>, vector<16x128xf32> -> vector<16x128xf32>
    %c0_3 = arith.constant 0 : index
    %c0_4 = arith.constant 0 : index
    %3 = vector.load %arg4[%c0_3, %c0_4] : memref<1x128xf32, #tpu.memory_space<vmem>>, vector<1x128xf32>
    %4 = vector.broadcast %3 : vector<1x128xf32> to vector<16x128xf32>
    %5 = arith.addf %2, %4 : vector<16x128xf32>
    %c0_5 = arith.constant 0 : index
    %c0_6 = arith.constant 0 : index
    %6 = vector.load %arg2[%c0_5, %c0_6] : memref<16x128xf32, #tpu.memory_space<vmem>>, vector<16x128xf32>
    %7 = arith.addf %5, %6 : vector<16x128xf32>
    %c0_7 = arith.constant 0 : index
    %c0_8 = arith.constant 0 : index
    %8 = vector.load %arg5[%c0_7, %c0_8] : memref<128x128xf32, #tpu.memory_space<vmem>>, vector<128x128xf32>
    %cst_9 = arith.constant dense<0.000000e+00> : vector<16x128xf32>
    %9 = tpu.matmul %7, %8, %cst_9 {dimension_numbers = #tpu.dot_dimension_numbers<[1], [0], [0], [1], [0, 0, 1, 1], [], []>} : vector<16x128xf32>, vector<128x128xf32>, vector<16x128xf32> -> vector<16x128xf32>
    %c0_10 = arith.constant 0 : index
    %c0_11 = arith.constant 0 : index
    %10 = vector.load %arg6[%c0_10, %c0_11] : memref<1x128xf32, #tpu.memory_space<vmem>>, vector<1x128xf32>
    %11 = vector.broadcast %10 : vector<1x128xf32> to vector<16x128xf32>
    %12 = arith.addf %9, %11 : vector<16x128xf32>
    %c0_12 = arith.constant 0 : index
    %c0_13 = arith.constant 0 : index
    %13 = vector.load %arg7[%c0_12, %c0_13] : memref<16x128xf32, #tpu.memory_space<vmem>>, vector<16x128xf32>
    tpu.vector_store %arg7[%c0_12, %c0_13], %12 {strides = array<i32>} : memref<16x128xf32, #tpu.memory_space<vmem>>, vector<16x128xf32>,
    return
  }
  func.func @transform_0(%arg0: i32) -> (i32, i32) {
    %c0_i32 = arith.constant 0 : i32
    %c0_i32_0 = arith.constant 0 : i32
    return %arg0, %c0_i32 : i32, i32
  }
  func.func @transform_1(%arg0: i32) -> (i32, i32) {
    %c0_i32 = arith.constant 0 : i32
    %c0_i32_0 = arith.constant 0 : i32
    return %arg0, %c0_i32 : i32, i32
  }
  func.func @transform_2(%arg0: i32) -> (i32, i32) {
    %c0_i32 = arith.constant 0 : i32
    %c0_i32_0 = arith.constant 0 : i32
    %c0_i32_1 = arith.constant 0 : i32
    return %c0_i32, %c0_i32_0 : i32, i32
  }
  func.func @transform_3(%arg0: i32) -> (i32, i32) {
    %c0_i32 = arith.constant 0 : i32
    %c0_i32_0 = arith.constant 0 : i32
    %c0_i32_1 = arith.constant 0 : i32
    return %c0_i32, %c0_i32_0 : i32, i32
  }
  func.func @transform_4(%arg0: i32) -> (i32, i32) {
    %c0_i32 = arith.constant 0 : i32
    %c0_i32_0 = arith.constant 0 : i32
    %c0_i32_1 = arith.constant 0 : i32
    return %c0_i32, %c0_i32_0 : i32, i32
  }
  func.func @transform_5(%arg0: i32) -> (i32, i32) {
    %c0_i32 = arith.constant 0 : i32
    %c0_i32_0 = arith.constant 0 : i32
    %c0_i32_1 = arith.constant 0 : i32
    return %c0_i32, %c0_i32_0 : i32, i32
  }
  func.func @transform_6(%arg0: i32) -> (i32, i32) {
    %c0_i32 = arith.constant 0 : i32
    %c0_i32_0 = arith.constant 0 : i32
    return %arg0, %c0_i32 : i32, i32
  }
}

</mosaic_0001>

<llo_original>
// kernel: tpu_custom_call.1
$region0: #{tpu_custom_call.1}
  #allocation0 [shape = 'u32[]', space=smem, size = 0x4, offset = 0x4, fixed_abs, tag = 'smem constant byte address 0x4 - core index']
  #allocation1 [shape = 'u32[144,128]{1,0:T(1,128)}', space=vmem, size = 0x12000, scoped, tag = 'internal scratch']
  %s0 = inlined_call_operand.hbm [shape: f32[16,128], index: 0, kind: input, shape index: {}]
  %s1 = inlined_call_operand.hbm [shape: f32[16,128], index: 1, kind: input, shape index: {}]
  %s2 = inlined_call_operand.hbm [shape: f32[128,128], index: 2, kind: input, shape index: {}]
  %s3 = inlined_call_operand.vmem [shape: f32[1,128], index: 3, kind: input, shape index: {}]
  %s4 = inlined_call_operand.hbm [shape: f32[128,128], index: 4, kind: input, shape index: {}]
  %s5 = inlined_call_operand.vmem [shape: f32[1,128], index: 5, kind: input, shape index: {}]
  %s6 = inlined_call_operand.hbm [shape: f32[16,128], index: 6, kind: output, shape index: {}]
  %s7 = sld [smem:[#allocation0]]
  $region50: #{tpu_custom_call.1} parent=0
    _
  %s9 = ssub.s32 1, %s7
  %s10 = scalar_select 0, %s9, %s7
  $region1: #{tpu_custom_call.1} parent=0
    #allocation2 [shape = 'u8[8192]{0}', space=vmem, size = 0x2000, scoped, tag = 'input window, operand 0, single buffered']
    #allocation3 [shape = 's32[1]{0}', space=sflag, size = 0x4, scoped, tag = 'scoped memory for tpu_custom_call.1']
    #allocation4 [shape = 's32[1]{0}', space=sflag, size = 0x4, scoped, tag = 'scoped memory for tpu_custom_call.1']
    #allocation5 [shape = 'u8[8192]{0}', space=vmem, size = 0x2000, scoped, tag = 'input window, operand 1, single buffered']
    #allocation6 [shape = 's32[1]{0}', space=sflag, size = 0x4, scoped, tag = 'scoped memory for tpu_custom_call.1']
    #allocation7 [shape = 'u8[65536]{0}', space=vmem, size = 0x10000, scoped, tag = 'input window, operand 2, single buffered']
    #allocation8 [shape = 'u8[65536]{0}', space=vmem, size = 0x10000, scoped, tag = 'input window, operand 4, single buffered']
    #allocation9 [shape = 's32[1]{0}', space=sflag, size = 0x4, scoped, tag = 'scoped memory for tpu_custom_call.1']
    #allocation10 [shape = 'u8[8192]{0}', space=vmem, size = 0x2000, scoped, tag = 'output window, operand 0, single buffered']
    %11 = vsyncpa [#allocation3], 0
    %12 = vsyncpa [#allocation6], 0
    %13 = vsyncpa [#allocation9], 0
    %14 = vsyncpa [#allocation4], 0
    // Predicated region
    $region2: #{tpu_custom_call.1} parent=1 // pred_check
      _
    $region3: #{tpu_custom_call.1} parent=1 // pred_check_branch
      %16 = sbr.rel (0) target = $region5
    $region4: #{tpu_custom_call.1} parent=1 // pred_region
      %s18 = ssub.s32 256, 256
      %19 = vsyncadd [#allocation3], %s18
      %s20 = sshll.u32 [#allocation2], 4
      %s21 = int_to_ptr.vmem [resolvable:$true] %s20
      %26 = dma.hbm_to_vmem [thread:$0]  %s0, 256, %s21, [#allocation3], 128, 128, 8
    $region5: #{tpu_custom_call.1} parent=1 // pred_fallthru
      _
    // Predicated region
    $region6: #{tpu_custom_call.1} parent=1 // pred_check
      _
    $region7: #{tpu_custom_call.1} parent=1 // pred_check_branch
      %28 = sbr.rel (0) target = $region9
    $region8: #{tpu_custom_call.1} parent=1 // pred_region
      %s30 = ssub.s32 256, 256
      %31 = vsyncadd [#allocation6], %s30
      %s32 = sshll.u32 [#allocation5], 4
      %s33 = int_to_ptr.vmem [resolvable:$true] %s32
      %38 = dma.hbm_to_vmem [thread:$0]  %s1, 256, %s33, [#allocation6], 128, 128, 8
    $region9: #{tpu_custom_call.1} parent=1 // pred_fallthru
      _
    // Predicated region
    $region10: #{tpu_custom_call.1} parent=1 // pred_check
      _
    $region11: #{tpu_custom_call.1} parent=1 // pred_check_branch
      %40 = sbr.rel (0) target = $region13
    $region12: #{tpu_custom_call.1} parent=1 // pred_region
      %s42 = ssub.s32 2048, 2048
      %43 = vsyncadd [#allocation6], %s42
      %s44 = sshll.u32 [#allocation7], 4
      %s45 = int_to_ptr.vmem [resolvable:$true] %s44
      %50 = dma.hbm_to_vmem [thread:$0]  %s2, 2048, %s45, [#allocation6], 128, 128, 8
    $region13: #{tpu_custom_call.1} parent=1 // pred_fallthru
      _
    // Predicated region
    $region14: #{tpu_custom_call.1} parent=1 // pred_check
      _
    $region15: #{tpu_custom_call.1} parent=1 // pred_check_branch
      %52 = sbr.rel (0) target = $region17
    $region16: #{tpu_custom_call.1} parent=1 // pred_region
      _
    $region17: #{tpu_custom_call.1} parent=1 // pred_fallthru
      _
    // Predicated region
    $region18: #{tpu_custom_call.1} parent=1 // pred_check
      _
    $region19: #{tpu_custom_call.1} parent=1 // pred_check_branch
      %54 = sbr.rel (0) target = $region21
    $region20: #{tpu_custom_call.1} parent=1 // pred_region
      %s56 = ssub.s32 2048, 2048
      %57 = vsyncadd [#allocation9], %s56
      %s58 = sshll.u32 [#allocation8], 4
      %s59 = int_to_ptr.vmem [resolvable:$true] %s58
      %64 = dma.hbm_to_vmem [thread:$0]  %s4, 2048, %s59, [#allocation9], 128, 128, 8
    $region21: #{tpu_custom_call.1} parent=1 // pred_fallthru
      _
    // Predicated region
    $region22: #{tpu_custom_call.1} parent=1 // pred_check
      _
    $region23: #{tpu_custom_call.1} parent=1 // pred_check_branch
      %66 = sbr.rel (0) target = $region25
    $region24: #{tpu_custom_call.1} parent=1 // pred_region
      _
    $region25: #{tpu_custom_call.1} parent=1 // pred_fallthru
      _
    // Predicated region
    $region26: #{tpu_custom_call.1} parent=1 // pred_check
      _
    $region27: #{tpu_custom_call.1} parent=1 // pred_check_branch
      %68 = sbr.rel (0) target = $region29
    $region28: #{tpu_custom_call.1} parent=1 // pred_region
      %69 = dma.done [#allocation3], 256
    $region29: #{tpu_custom_call.1} parent=1 // pred_fallthru
      _
    // Predicated region
    $region30: #{tpu_custom_call.1} parent=1 // pred_check
      _
    $region31: #{tpu_custom_call.1} parent=1 // pred_check_branch
      %71 = sbr.rel (0) target = $region33
    $region32: #{tpu_custom_call.1} parent=1 // pred_region
      %72 = dma.done [#allocation6], 256
    $region33: #{tpu_custom_call.1} parent=1 // pred_fallthru
      _
    // Predicated region
    $region34: #{tpu_custom_call.1} parent=1 // pred_check
      _
    $region35: #{tpu_custom_call.1} parent=1 // pred_check_branch
      %74 = sbr.rel (0) target = $region37
    $region36: #{tpu_custom_call.1} parent=1 // pred_region
      %75 = dma.done [#allocation6], 2048
    $region37: #{tpu_custom_call.1} parent=1 // pred_fallthru
      _
    // Predicated region
    $region38: #{tpu_custom_call.1} parent=1 // pred_check
      _
    $region39: #{tpu_custom_call.1} parent=1 // pred_check_branch
      %77 = sbr.rel (0) target = $region41
    $region40: #{tpu_custom_call.1} parent=1 // pred_region
      %78 = dma.done [#allocation9], 2048
    $region41: #{tpu_custom_call.1} parent=1 // pred_fallthru
      _
    %v79 = vld [vmem:[#allocation2] sm:$0xff]
    %v80 = vld [vmem:[#allocation2 + $0x8] sm:$0xff]
    %v81 = vld [vmem:[#allocation7] sm:$0xff]
    %v82 = vld [vmem:[#allocation7 + $0x8] sm:$0xff]
    %v83 = vld [vmem:[#allocation7 + $0x10] sm:$0xff]
    %v84 = vld [vmem:[#allocation7 + $0x18] sm:$0xff]
    %v85 = vld [vmem:[#allocation7 + $0x20] sm:$0xff]
    %v86 = vld [vmem:[#allocation7 + $0x28] sm:$0xff]
    %v87 = vld [vmem:[#allocation7 + $0x30] sm:$0xff]
    %v88 = vld [vmem:[#allocation7 + $0x38] sm:$0xff]
    %v89 = vld [vmem:[#allocation7 + $0x40] sm:$0xff]
    %v90 = vld [vmem:[#allocation7 + $0x48] sm:$0xff]
    %v91 = vld [vmem:[#allocation7 + $0x50] sm:$0xff]
    %v92 = vld [vmem:[#allocation7 + $0x58] sm:$0xff]
    %v93 = vld [vmem:[#allocation7 + $0x60] sm:$0xff]
    %v94 = vld [vmem:[#allocation7 + $0x68] sm:$0xff]
    %v95 = vld [vmem:[#allocation7 + $0x70] sm:$0xff]
    %v96 = vld [vmem:[#allocation7 + $0x78] sm:$0xff]
    %v97 = vld [vmem:[%s3] sm:$0x1]
    %v99 = vlaneseq
    %v100 = vshrl.u32 %v99, 7
    %v101 = vsub.s32 0, %v100
    %v102 = vrot.slane %v97, %v101
    %104 = vmatprep.subr.mxu0 0.0
    %105 = vmatpush1.msra.mxu0 %v81
    %106 = vmatprep.subr.mxu0 0.0
    %107 = vmatpush1.msra.mxu0 %v82
    %108 = vmatprep.subr.mxu0 0.0
    %109 = vmatpush1.msra.mxu0 %v83
    %110 = vmatprep.subr.mxu0 0.0
    %111 = vmatpush1.msra.mxu0 %v84
    %112 = vmatprep.subr.mxu0 0.0
    %113 = vmatpush1.msra.mxu0 %v85
    %114 = vmatprep.subr.mxu0 0.0
    %115 = vmatpush1.msra.mxu0 %v86
    %116 = vmatprep.subr.mxu0 0.0
    %117 = vmatpush1.msra.mxu0 %v87
    %118 = vmatprep.subr.mxu0 0.0
    %119 = vmatpush1.msra.mxu0 %v88
    %120 = vmatprep.subr.mxu0 0.0
    %121 = vmatpush1.msra.mxu0 %v89
    %122 = vmatprep.subr.mxu0 0.0
    %123 = vmatpush1.msra.mxu0 %v90
    %124 = vmatprep.subr.mxu0 0.0
    %125 = vmatpush1.msra.mxu0 %v91
    %126 = vmatprep.subr.mxu0 0.0
    %127 = vmatpush1.msra.mxu0 %v92
    %128 = vmatprep.subr.mxu0 0.0
    %129 = vmatpush1.msra.mxu0 %v93
    %130 = vmatprep.subr.mxu0 0.0
    %131 = vmatpush1.msra.mxu0 %v94
    %132 = vmatprep.subr.mxu0 0.0
    %133 = vmatpush1.msra.mxu0 %v95
    %134 = vmatprep.subr.mxu0 0.0
    %135 = vmatpush1.msra.mxu0 %v96
    %136 = vmatprep.subr.mxu0 0.0
    %137 = vmatpush1.msra.mxu0 0.0
    %138 = vmatprep.subr.mxu0 0.0
    %139 = vmatpush1.msra.mxu0 0.0
    %140 = vmatprep.subr.mxu0 0.0
    %141 = vmatpush1.msra.mxu0 0.0
    %142 = vmatprep.subr.mxu0 0.0
    %143 = vmatpush1.msra.mxu0 0.0
    %144 = vmatprep.subr.mxu0 0.0
    %145 = vmatpush1.msra.mxu0 0.0
    %146 = vmatprep.subr.mxu0 0.0
    %147 = vmatpush1.msra.mxu0 0.0
    %148 = vmatprep.subr.mxu0 0.0
    %149 = vmatpush1.msra.mxu0 0.0
    %150 = vmatprep.subr.mxu0 0.0
    %151 = vmatpush1.msra.mxu0 0.0
    %152 = vmatprep.subr.mxu0 0.0
    %153 = vmatpush1.msra.mxu0 0.0
    %154 = vmatprep.subr.mxu0 0.0
    %155 = vmatpush1.msra.mxu0 0.0
    %156 = vmatprep.subr.mxu0 0.0
    %157 = vmatpush1.msra.mxu0 0.0
    %158 = vmatprep.subr.mxu0 0.0
    %159 = vmatpush1.msra.mxu0 0.0
    %160 = vmatprep.subr.mxu0 0.0
    %161 = vmatpush1.msra.mxu0 0.0
    %162 = vmatprep.subr.mxu0 0.0
    %163 = vmatpush1.msra.mxu0 0.0
    %164 = vmatprep.subr.mxu0 0.0
    %165 = vmatpush1.msra.mxu0 0.0
    %166 = vmatprep.subr.mxu0 0.0
    %167 = vmatpush1.msra.mxu0 0.0
    %168 = vmatprep.mubr.f32.mxu0 0.0
    %169 = vmatmul.mubr.f32.gmra.mrb[0].mxu0 %v79
    %v170 = vpop.f32.mrb[0].mxu0
    %v171 = vadd.f32 %v102, %v170
    %v172 = vpop.f32.mrb[0].mxu0
    %173 = vmatprep.mubr.f32.mxu0 0.0
    %174 = vmatmul.mubr.f32.gmra.mrb[0].mxu0 %v80
    %v175 = vpop.f32.mrb[0].mxu0
    %v176 = vadd.f32 %v102, %v175
    %v177 = vpop.f32.mrb[0].mxu0
    %178 = vdwg.mxu0
    %v179 = vld [vmem:[#allocation5] sm:$0xff]
    %v180 = vld [vmem:[#allocation5 + $0x8] sm:$0xff]
    %v181 = vadd.f32 %v171, %v179
    %v182 = vadd.f32 %v176, %v180
    %v183 = vld [vmem:[#allocation8] sm:$0xff]
    %v184 = vld [vmem:[#allocation8 + $0x8] sm:$0xff]
    %v185 = vld [vmem:[#allocation8 + $0x10] sm:$0xff]
    %v186 = vld [vmem:[#allocation8 + $0x18] sm:$0xff]
    %v187 = vld [vmem:[#allocation8 + $0x20] sm:$0xff]
    %v188 = vld [vmem:[#allocation8 + $0x28] sm:$0xff]
    %v189 = vld [vmem:[#allocation8 + $0x30] sm:$0xff]
    %v190 = vld [vmem:[#allocation8 + $0x38] sm:$0xff]
    %v191 = vld [vmem:[#allocation8 + $0x40] sm:$0xff]
    %v192 = vld [vmem:[#allocation8 + $0x48] sm:$0xff]
    %v193 = vld [vmem:[#allocation8 + $0x50] sm:$0xff]
    %v194 = vld [vmem:[#allocation8 + $0x58] sm:$0xff]
    %v195 = vld [vmem:[#allocation8 + $0x60] sm:$0xff]
    %v196 = vld [vmem:[#allocation8 + $0x68] sm:$0xff]
    %v197 = vld [vmem:[#allocation8 + $0x70] sm:$0xff]
    %v198 = vld [vmem:[#allocation8 + $0x78] sm:$0xff]
    %v199 = vld [vmem:[%s5] sm:$0x1]
    %v201 = vlaneseq
    %v202 = vshrl.u32 %v201, 7
    %v203 = vsub.s32 0, %v202
    %v204 = vrot.slane %v199, %v203
    %206 = vmatprep.subr.mxu0 0.0
    %207 = vmatpush1.msra.mxu0 %v183
    %208 = vmatprep.subr.mxu0 0.0
    %209 = vmatpush1.msra.mxu0 %v184
    %210 = vmatprep.subr.mxu0 0.0
    %211 = vmatpush1.msra.mxu0 %v185
    %212 = vmatprep.subr.mxu0 0.0
    %213 = vmatpush1.msra.mxu0 %v186
    %214 = vmatprep.subr.mxu0 0.0
    %215 = vmatpush1.msra.mxu0 %v187
    %216 = vmatprep.subr.mxu0 0.0
    %217 = vmatpush1.msra.mxu0 %v188
    %218 = vmatprep.subr.mxu0 0.0
    %219 = vmatpush1.msra.mxu0 %v189
    %220 = vmatprep.subr.mxu0 0.0
    %221 = vmatpush1.msra.mxu0 %v190
    %222 = vmatprep.subr.mxu0 0.0
    %223 = vmatpush1.msra.mxu0 %v191
    %224 = vmatprep.subr.mxu0 0.0
    %225 = vmatpush1.msra.mxu0 %v192
    %226 = vmatprep.subr.mxu0 0.0
    %227 = vmatpush1.msra.mxu0 %v193
    %228 = vmatprep.subr.mxu0 0.0
    %229 = vmatpush1.msra.mxu0 %v194
    %230 = vmatprep.subr.mxu0 0.0
    %231 = vmatpush1.msra.mxu0 %v195
    %232 = vmatprep.subr.mxu0 0.0
    %233 = vmatpush1.msra.mxu0 %v196
    %234 = vmatprep.subr.mxu0 0.0
    %235 = vmatpush1.msra.mxu0 %v197
    %236 = vmatprep.subr.mxu0 0.0
    %237 = vmatpush1.msra.mxu0 %v198
    %238 = vmatprep.subr.mxu0 0.0
    %239 = vmatpush1.msra.mxu0 0.0
    %240 = vmatprep.subr.mxu0 0.0
    %241 = vmatpush1.msra.mxu0 0.0
    %242 = vmatprep.subr.mxu0 0.0
    %243 = vmatpush1.msra.mxu0 0.0
    %244 = vmatprep.subr.mxu0 0.0
    %245 = vmatpush1.msra.mxu0 0.0
    %246 = vmatprep.subr.mxu0 0.0
    %247 = vmatpush1.msra.mxu0 0.0
    %248 = vmatprep.subr.mxu0 0.0
    %249 = vmatpush1.msra.mxu0 0.0
    %250 = vmatprep.subr.mxu0 0.0
    %251 = vmatpush1.msra.mxu0 0.0
    %252 = vmatprep.subr.mxu0 0.0
    %253 = vmatpush1.msra.mxu0 0.0
    %254 = vmatprep.subr.mxu0 0.0
    %255 = vmatpush1.msra.mxu0 0.0
    %256 = vmatprep.subr.mxu0 0.0
    %257 = vmatpush1.msra.mxu0 0.0
    %258 = vmatprep.subr.mxu0 0.0
    %259 = vmatpush1.msra.mxu0 0.0
    %260 = vmatprep.subr.mxu0 0.0
    %261 = vmatpush1.msra.mxu0 0.0
    %262 = vmatprep.subr.mxu0 0.0
    %263 = vmatpush1.msra.mxu0 0.0
    %264 = vmatprep.subr.mxu0 0.0
    %265 = vmatpush1.msra.mxu0 0.0
    %266 = vmatprep.subr.mxu0 0.0
    %267 = vmatpush1.msra.mxu0 0.0
    %268 = vmatprep.subr.mxu0 0.0
    %269 = vmatpush1.msra.mxu0 0.0
    %270 = vmatprep.mubr.f32.mxu0 0.0
    %271 = vmatmul.mubr.f32.gmra.mrb[0].mxu0 %v181
    %v272 = vpop.f32.mrb[0].mxu0
    %v273 = vadd.f32 %v204, %v272
    %v274 = vpop.f32.mrb[0].mxu0
    %275 = vmatprep.mubr.f32.mxu0 0.0
    %276 = vmatmul.mubr.f32.gmra.mrb[0].mxu0 %v182
    %v277 = vpop.f32.mrb[0].mxu0
    %v278 = vadd.f32 %v204, %v277
    %v279 = vpop.f32.mrb[0].mxu0
    %280 = vdwg.mxu0
    %281 = vst [vmem:[#allocation10] sm:$0xff] %v273
    %282 = vst [vmem:[#allocation10 + $0x8] sm:$0xff] %v278
    // Predicated region
    $region42: #{tpu_custom_call.1} parent=1 // pred_check
      _
    $region43: #{tpu_custom_call.1} parent=1 // pred_check_branch
      %284 = sbr.rel (0) target = $region45
    $region44: #{tpu_custom_call.1} parent=1 // pred_region
      %s286 = ssub.s32 256, 256
      %287 = vsyncadd [#allocation4], %s286
      %s288 = sshll.u32 [#allocation10], 4
      %s289 = int_to_ptr.vmem [resolvable:$true] %s288
      %294 = dma.vmem_to_hbm [thread:$0]  %s289, 256, %s6, [#allocation4], 128, 128, 8
    $region45: #{tpu_custom_call.1} parent=1 // pred_fallthru
      _
    // Predicated region
    $region46: #{tpu_custom_call.1} parent=1 // pred_check
      _
    $region47: #{tpu_custom_call.1} parent=1 // pred_check_branch
      %296 = sbr.rel (0) target = $region49
    $region48: #{tpu_custom_call.1} parent=1 // pred_region
      %297 = dma.done [#allocation4], 256
    $region49: #{tpu_custom_call.1} parent=1 // pred_fallthru
      _
    %298 = vsyncpa [#allocation3], 1
    %299 = vsyncpa [#allocation6], 1
    %300 = vsyncpa [#allocation9], 1
    %301 = vsyncpa [#allocation4], 1

</llo_original>
